<compile_context>
chip_gen: v5e
topology: v5e:2x2
jax: 0.10.0
libtpu: 0.0.40
codegen_flags: <defaults>
</compile_context>

<pallas_src>
import functools

import numpy as np
import jax
import jax.numpy as jnp
from jax import lax
from jax.experimental import pallas as pl
from jax.experimental.pallas import tpu as pltpu


def _round_up(x, m):
    return ((x + m - 1) // m) * m


def _pick_t_tile(T):
    for t in (512, 256, 128, 64, 32, 16, 8):
        if T % t == 0:
            return t
    return T


# ------------------ Pallas kernel #1: fused softmax + doc-column gather ------------------ #
def _softmax_gather_kernel(x_ref, doc_ref, o_ref, *, inv_alpha):
    # x_ref : (1, tT, V) logits block for one batch element
    # doc_ref: (1, 1, C) int32 doc-token ids, -1 = (left/right) padding column
    # o_ref : (1, tT, C) gathered probabilities
    x = x_ref[0].astype(jnp.float32) * inv_alpha            # (tT, V)
    m = jnp.max(x, axis=-1, keepdims=True)
    e = jnp.exp(x - m)                                       # (tT, V)
    s = jnp.sum(e, axis=-1, keepdims=True)                   # (tT, 1) exact f32 row sum

    V = e.shape[-1]
    C = doc_ref.shape[-1]
    docs = doc_ref[0]                                        # (1, C) int32
    one_hot = (lax.broadcasted_iota(jnp.int32, (V, C), 0) == docs).astype(jnp.bfloat16)

    # Exact gather via MXU: each one-hot column has exactly one 1 (or none for padding),
    # so dot(e, one_hot)[t, j] == e[t, doc[j]] (or 0).  Split e into bf16 hi/lo parts so
    # the result stays f32-accurate regardless of the MXU's bf16 pass precision.
    e_hi = e.astype(jnp.bfloat16)
    e_lo = (e - e_hi.astype(jnp.float32)).astype(jnp.bfloat16)
    g = (jnp.dot(e_hi, one_hot, preferred_element_type=jnp.float32) +
         jnp.dot(e_lo, one_hot, preferred_element_type=jnp.float32))   # (tT, C)

    o_ref[0] = g * (1.0 / s)


def softmax_gather_pallas(logits, doc_idx, alpha):
    """logits (B,T,V) f32, doc_idx (B,1,C) int32 (-1 padding) -> gathered probs (B,T,C)."""
    B, T, V = logits.shape
    _, _, C = doc_idx.shape
    tT = _pick_t_tile(T)
    nT = T // tT
    kernel = functools.partial(_softmax_gather_kernel, inv_alpha=1.0 / float(alpha))
    return pl.pallas_call(
        kernel,
        out_shape=jax.ShapeDtypeStruct((B, T, C), jnp.float32),
        grid=(B, nT),
        in_specs=[
            pl.BlockSpec((1, tT, V), lambda b, t: (b, t, 0)),
            pl.BlockSpec((1, 1, C), lambda b, t: (b, 0, 0)),
        ],
        out_specs=pl.BlockSpec((1, tT, C), lambda b, t: (b, t, 0)),
        compiler_params=pltpu.CompilerParams(
            # both axes independent -> shards across the 2 TCs on v7x; no-op on v5e/v6e.
            dimension_semantics=("parallel", "parallel"),
            # explicit, generation-safe scoped VMEM (fits v7x's 64 MiB physical VMEM).
            vmem_limit_bytes=32 * 1024 * 1024,
        ),
    )(logits, doc_idx)


# --------------------------- Pallas kernel #2: anti-diagonal DP -------------------------- #
def _calcs_dp_kernel(pskew_ref, o_ref, d0_ref, d1_ref, *, dn_real, kd):
    # pskew_ref: (kd, Bp, Cp) chunk of anti-diagonals; d0/d1: persistent VMEM carries.
    pid = pl.program_id(0)

    @pl.when(pid == 0)
    def _init():
        d0_ref[...] = jnp.zeros_like(d0_ref)
        d1_ref[...] = jnp.zeros_like(d1_ref)

    Bp, Cp = d0_ref.shape
    # lane-0 mask hoisted out of the loop (JAX does not CSE broadcast_in_dim).
    lane0 = lax.broadcasted_iota(jnp.int32, (Bp, Cp), 1) == 0
    base = pid * kd

    def body(i, carry):
        d0, d1 = carry                           # d0 = diag d-1, d1 = diag d-2
        p = pskew_ref[i]                         # (Bp, Cp) probs on anti-diagonal base+i
        d0s = jnp.where(lane0, 0.0, pltpu.roll(d0, shift=1, axis=1))   # D[t, j-1]
        d1s = jnp.where(lane0, 0.0, pltpu.roll(d1, shift=1, axis=1))   # D[t-1, j-1]
        new = p * (d1s + 1.0) + (1.0 - p) * jnp.maximum(d0, d0s)
        live = (base + i) < dn_real              # freeze carries on padded diagonals
        return (jnp.where(live, new, d0), jnp.where(live, d0, d1))

    d0, d1 = lax.fori_loop(0, kd, body, (d0_ref[...], d1_ref[...]),
                           unroll=min(kd, 8))
    d0_ref[...] = d0
    d1_ref[...] = d1

    @pl.when(pid == pl.num_programs(0) - 1)
    def _finish():
        o_ref[...] = jnp.minimum(d0, 100.0)      # per-example clamp before the mean


def calcs_dp_pallas(pskew, dn_real, kd):
    """pskew (Dn_pad, Bp, Cp) f32 -> clamped final DP state (Bp, Cp) f32."""
    Dn_pad, Bp, Cp = pskew.shape
    n_chunks = Dn_pad // kd
    kernel = functools.partial(_calcs_dp_kernel, dn_real=dn_real, kd=kd)
    return pl.pallas_call(
        kernel,
        out_shape=jax.ShapeDtypeStruct((Bp, Cp), jnp.float32),
        grid=(n_chunks,),
        in_specs=[pl.BlockSpec((kd, Bp, Cp), lambda i: (i, 0, 0))],
        out_specs=pl.BlockSpec((Bp, Cp), lambda i: (0, 0)),
        scratch_shapes=[pltpu.VMEM((Bp, Cp), jnp.float32),
                        pltpu.VMEM((Bp, Cp), jnp.float32)],
        compiler_params=pltpu.CompilerParams(
            dimension_semantics=("arbitrary",),          # sequential carry over diagonals
            vmem_limit_bytes=32 * 1024 * 1024,
        ),
    )(pskew)


# ------------------------------------ forward wrapper ------------------------------------ #
def calcs_forward(logits, docs, alpha=1.0):
    """Equivalent of CaLCS(temp=alpha).forward(batch=logits, docs=docs)."""
    B, T, V = logits.shape
    lengths = [int(d.shape[0]) for d in docs]
    mxlen = max(lengths)
    C_pad = _round_up(mxlen, 128)                 # lane-dense DP width
    B_pad = _round_up(B, 8)                       # sublane-dense DP batch
    Dn = T + mxlen - 1
    kd = 8 if Dn <= 256 else 256                  # diagonals per pipelined DP chunk
    Dn_pad = _round_up(Dn, kd)

    # padded doc-index table: column j of example b holds the doc token id, -1 marks the
    # left-pad columns (and the right C_pad padding) -> gathered probability is exactly 0.
    doc_np = np.full((B, 1, C_pad), -1, dtype=np.int32)
    for b in range(B):
        doc_np[b, 0, mxlen - lengths[b]:mxlen] = np.asarray(docs[b], dtype=np.int32)
    doc_idx = jnp.asarray(doc_np)

    @jax.jit
    def run(logits, doc_idx):
        P = softmax_gather_pallas(logits, doc_idx, alpha)          # (B, T, C_pad)

        # Skew P into (Dn_pad, B, C_pad): pskew[d, b, j] = P[b, d-j, j] (0 where t out of range).
        # Built directly in DP layout with one batched gather (no transpose pass, no per-b loop).
        d = jnp.arange(Dn_pad)[:, None]                            # (Dn_pad, 1)
        j = jnp.arange(C_pad)[None, :]                             # (1, C_pad)
        t = d - j
        valid = (t >= 0) & (t < T)
        t_cl = jnp.clip(t, 0, T - 1)
        b_ix = jnp.arange(B)[None, :, None]                        # (1, B, 1)
        gathered = P[b_ix, t_cl[:, None, :], j[:, None, :]]        # (Dn_pad, B, C_pad)
        pskew = jnp.where(valid[:, None, :], gathered, 0.0)
        if B_pad > B:                                              # zero rows are DP-inert
            pskew = jnp.pad(pskew, ((0, 0), (0, B_pad - B), (0, 0)))

        dp = calcs_dp_pallas(pskew, Dn, kd)                        # (B_pad, C_pad), min(.,100)
        corner = dp[:B, mxlen - 1]                                 # D[T-1, mxlen-1] per example
        return -jnp.log(jnp.mean(corner) / mxlen)

    return run(logits, doc_idx)


# ------------------------------------ numpy reference ------------------------------------ #
def calcs_reference(logits, docs, alpha=1.0):
    logits = np.asarray(logits, np.float64)
    B, T, V = logits.shape
    x = logits / alpha
    e = np.exp(x - x.max(axis=2, keepdims=True))
    probs = e / e.sum(axis=2, keepdims=True)
    lengths = [len(d) for d in docs]
    mxlen = max(lengths)
    vals = []
    for b in range(B):
        g = probs[b][:, np.asarray(docs[b])]
        P = np.concatenate([np.zeros((T, mxlen - lengths[b])), g], axis=1)
        D = np.zeros((T + 1, mxlen + 1))
        for t in range(1, T + 1):
            for j in range(1, mxlen + 1):
                p = P[t - 1, j - 1]
                D[t, j] = p * (D[t - 1, j - 1] + 1.0) + (1.0 - p) * max(D[t - 1, j], D[t, j - 1])
        vals.append(min(D[T, mxlen], 100.0))
    return -np.log(np.mean(vals) / mxlen)


if __name__ == "__main__":
    key = jax.random.PRNGKey(0)
    B, T, V = 2, 8, 32                      # batch, seq_len, vocab
    logits = jax.random.normal(key, (B, T, V), dtype=jnp.float32)
    # variable-length "docs" (token indices into the vocab), as in the PyTorch module
    docs = [jnp.array([3, 7, 1, 20, 5], dtype=jnp.int32),
            jnp.array([2, 9, 14, 0, 31, 6, 11], dtype=jnp.int32)]

    out = calcs_forward(logits, docs, alpha=1.0)
    out = jax.block_until_ready(out)

    ref = calcs_reference(np.asarray(logits), [np.asarray(d) for d in docs], alpha=1.0)
    assert np.allclose(float(out), float(ref), rtol=1e-4, atol=1e-4), (float(out), float(ref))
    print("KERNEL_OK")
</pallas_src>

<mosaic_0001>
module attributes {stable_mosaic.version = 11 : i64} {
  func.func @_softmax_gather_kernel(%arg0: i32, %arg1: i32, %arg2: memref<1x8x32xf32, #tpu.memory_space<vmem>>, %arg3: memref<1x1x128xi32, #tpu.memory_space<vmem>>, %arg4: memref<1x8x128xf32, #tpu.memory_space<vmem>>) attributes {dimension_semantics = [#tpu.dimension_semantics<parallel>, #tpu.dimension_semantics<parallel>], iteration_bounds = array<i64: 2, 1>, scalar_prefetch = 0 : i64, scratch_operands = 0 : i64, tpu.core_type = #tpu.core_type<tc>, window_params = [{transform_indices = @transform_0, window_bounds = array<i64: 1, 8, 32>}, {transform_indices = @transform_1, window_bounds = array<i64: 1, 1, 128>}, {transform_indices = @transform_2, window_bounds = array<i64: 1, 8, 128>}]} {
    %c0 = arith.constant 0 : index
    %c0_0 = arith.constant 0 : index
    %c0_1 = arith.constant 0 : index
    %0 = vector.load %arg2[%c0, %c0_0, %c0_1] : memref<1x8x32xf32, #tpu.memory_space<vmem>>, vector<1x8x32xf32>
    %1 = vector.shape_cast %0 : vector<1x8x32xf32> to vector<8x32xf32>
    %cst = arith.constant 1.000000e+00 : f32
    %2 = vector.broadcast %cst : f32 to vector<8x32xf32>
    %3 = arith.mulf %1, %2 : vector<8x32xf32>
    %cst_2 = arith.constant dense<0xFF800000> : vector<8xf32>
    %4 = vector.multi_reduction <maximumf>, %3, %cst_2 [1] : vector<8x32xf32> to vector<8xf32>
    %5 = vector.shape_cast %4 : vector<8xf32> to vector<8x1xf32>
    %6 = vector.broadcast %5 : vector<8x1xf32> to vector<8x32xf32>
    %7 = arith.subf %3, %6 : vector<8x32xf32>
    %8 = math.exp %7 : vector<8x32xf32>
    %cst_3 = arith.constant dense<0.000000e+00> : vector<8xf32>
    %9 = vector.multi_reduction <add>, %8, %cst_3 [1] : vector<8x32xf32> to vector<8xf32>
    %10 = vector.shape_cast %9 : vector<8xf32> to vector<8x1xf32>
    %c0_4 = arith.constant 0 : index
    %c0_5 = arith.constant 0 : index
    %c0_6 = arith.constant 0 : index
    %11 = vector.load %arg3[%c0_4, %c0_5, %c0_6] : memref<1x1x128xi32, #tpu.memory_space<vmem>>, vector<1x1x128xi32>
    %12 = vector.shape_cast %11 : vector<1x1x128xi32> to vector<1x128xi32>
    %13 = tpu.iota {dimensions = array<i32: 0>} : vector<32x128xi32>
    %14 = vector.broadcast %12 : vector<1x128xi32> to vector<32x128xi32>
    %15 = arith.cmpi eq, %13, %14 : vector<32x128xi32>
    %16 = arith.extui %15 : vector<32x128xi1> to vector<32x128xi32>
    %17 = arith.sitofp %16 : vector<32x128xi32> to vector<32x128xf32>
    %18 = arith.truncf %17 : vector<32x128xf32> to vector<32x128xbf16>
    %19 = arith.truncf %8 : vector<8x32xf32> to vector<8x32xbf16>
    %20 = arith.extf %19 : vector<8x32xbf16> to vector<8x32xf32>
    %21 = arith.subf %8, %20 : vector<8x32xf32>
    %22 = arith.truncf %21 : vector<8x32xf32> to vector<8x32xbf16>
    %cst_7 = arith.constant dense<0.000000e+00> : vector<8x128xf32>
    %23 = tpu.matmul %19, %18, %cst_7 {dimension_numbers = #tpu.dot_dimension_numbers<[1], [0], [0], [1], [0, 0, 1, 1], [], []>} : vector<8x32xbf16>, vector<32x128xbf16>, vector<8x128xf32> -> vector<8x128xf32>
    %cst_8 = arith.constant dense<0.000000e+00> : vector<8x128xf32>
    %24 = tpu.matmul %22, %18, %cst_8 {dimension_numbers = #tpu.dot_dimension_numbers<[1], [0], [0], [1], [0, 0, 1, 1], [], []>} : vector<8x32xbf16>, vector<32x128xbf16>, vector<8x128xf32> -> vector<8x128xf32>
    %25 = arith.addf %23, %24 : vector<8x128xf32>
    %cst_9 = arith.constant 1.000000e+00 : f32
    %26 = vector.broadcast %cst_9 : f32 to vector<8x1xf32>
    %27 = arith.divf %26, %10 : vector<8x1xf32>
    %28 = vector.broadcast %27 : vector<8x1xf32> to vector<8x128xf32>
    %29 = arith.mulf %25, %28 : vector<8x128xf32>
    %c0_10 = arith.constant 0 : index
    %c0_11 = arith.constant 0 : index
    %c0_12 = arith.constant 0 : index
    %30 = vector.load %arg4[%c0_10, %c0_11, %c0_12] : memref<1x8x128xf32, #tpu.memory_space<vmem>>, vector<1x8x128xf32>
    %31 = vector.shape_cast %30 : vector<1x8x128xf32> to vector<8x128xf32>
    %32 = vector.shape_cast %29 : vector<8x128xf32> to vector<1x8x128xf32>
    tpu.vector_store %arg4[%c0_10, %c0_11, %c0_12], %32 {strides = array<i32>} : memref<1x8x128xf32, #tpu.memory_space<vmem>>, vector<1x8x128xf32>,
    return
  }
  func.func @transform_0(%arg0: i32, %arg1: i32) -> (i32, i32, i32) {
    %c0_i32 = arith.constant 0 : i32
    %c0_i32_0 = arith.constant 0 : i32
    return %arg0, %arg1, %c0_i32 : i32, i32, i32
  }
  func.func @transform_1(%arg0: i32, %arg1: i32) -> (i32, i32, i32) {
    %c0_i32 = arith.constant 0 : i32
    %c0_i32_0 = arith.constant 0 : i32
    %c0_i32_1 = arith.constant 0 : i32
    return %arg0, %c0_i32, %c0_i32_0 : i32, i32, i32
  }
  func.func @transform_2(%arg0: i32, %arg1: i32) -> (i32, i32, i32) {
    %c0_i32 = arith.constant 0 : i32
    %c0_i32_0 = arith.constant 0 : i32
    return %arg0, %arg1, %c0_i32 : i32, i32, i32
  }
}

module attributes {stable_mosaic.version = 11 : i64} {
  func.func @_calcs_dp_kernel(%arg0: i32, %arg1: memref<8x8x128xf32, #tpu.memory_space<vmem>>, %arg2: memref<8x128xf32, #tpu.memory_space<vmem>>, %arg3: memref<8x128xf32, #tpu.memory_space<vmem>>, %arg4: memref<8x128xf32, #tpu.memory_space<vmem>>) attributes {dimension_semantics = [#tpu.dimension_semantics<arbitrary>], iteration_bounds = array<i64: 2>, scalar_prefetch = 0 : i64, scratch_operands = 2 : i64, tpu.core_type = #tpu.core_type<tc>, window_params = [{transform_indices = @transform_0, window_bounds = array<i64: 8, 8, 128>}, {pipeline_mode = #tpu.pipeline_mode<synchronous>, transform_indices = @transform_1, window_bounds = array<i64: 8, 128>}]} {
    %c0_i32 = arith.constant 0 : i32
    %0 = arith.cmpi eq, %arg0, %c0_i32 : i32
    %1 = arith.extui %0 : i1 to i32
    %c0_i32_0 = arith.constant 0 : i32
    %2 = arith.cmpi ne, %1, %c0_i32_0 : i32
    scf.if %2 {
      %cst_83 = arith.constant 0.000000e+00 : f32
      %182 = vector.broadcast %cst_83 : f32 to vector<8x128xf32>
      %c0_84 = arith.constant 0 : index
      %c0_85 = arith.constant 0 : index
      %183 = vector.load %arg3[%c0_84, %c0_85] : memref<8x128xf32, #tpu.memory_space<vmem>>, vector<8x128xf32>
      tpu.vector_store %arg3[%c0_84, %c0_85], %182 {strides = array<i32>} : memref<8x128xf32, #tpu.memory_space<vmem>>, vector<8x128xf32>,
      %cst_86 = arith.constant 0.000000e+00 : f32
      %184 = vector.broadcast %cst_86 : f32 to vector<8x128xf32>
      %c0_87 = arith.constant 0 : index
      %c0_88 = arith.constant 0 : index
      %185 = vector.load %arg4[%c0_87, %c0_88] : memref<8x128xf32, #tpu.memory_space<vmem>>, vector<8x128xf32>
      tpu.vector_store %arg4[%c0_87, %c0_88], %184 {strides = array<i32>} : memref<8x128xf32, #tpu.memory_space<vmem>>, vector<8x128xf32>,
    } else {
    }
    %3 = tpu.iota {dimensions = array<i32: 1>} : vector<8x128xi32>
    %c0_i32_1 = arith.constant 0 : i32
    %4 = vector.broadcast %c0_i32_1 : i32 to vector<8x128xi32>
    %5 = arith.cmpi eq, %3, %4 : vector<8x128xi32>
    %c8_i32 = arith.constant 8 : i32
    %6 = arith.muli %arg0, %c8_i32 : i32
    %c0 = arith.constant 0 : index
    %c0_2 = arith.constant 0 : index
    %7 = vector.load %arg3[%c0, %c0_2] : memref<8x128xf32, #tpu.memory_space<vmem>>, vector<8x128xf32>
    %c0_3 = arith.constant 0 : index
    %c0_4 = arith.constant 0 : index
    %8 = vector.load %arg4[%c0_3, %c0_4] : memref<8x128xf32, #tpu.memory_space<vmem>>, vector<8x128xf32>
    %c0_i32_5 = arith.constant 0 : i32
    %9 = arith.index_cast %c0_i32_5 : i32 to index
    %c0_6 = arith.constant 0 : index
    %c0_7 = arith.constant 0 : index
    %10 = vector.load %arg1[%9, %c0_6, %c0_7] : memref<8x8x128xf32, #tpu.memory_space<vmem>>, vector<1x8x128xf32>
    %11 = vector.shape_cast %10 : vector<1x8x128xf32> to vector<8x128xf32>
    %c1_i32 = arith.constant 1 : i32
    %12 = tpu.dynamic_rotate %7 by %c1_i32 dim 1 : vector<8x128xf32>, i32 -> vector<8x128xf32>
    %cst = arith.constant 0.000000e+00 : f32
    %13 = vector.broadcast %cst : f32 to vector<8x128xf32>
    %14 = arith.select %5, %13, %12 : vector<8x128xi1>, vector<8x128xf32>
    %c1_i32_8 = arith.constant 1 : i32
    %15 = tpu.dynamic_rotate %8 by %c1_i32_8 dim 1 : vector<8x128xf32>, i32 -> vector<8x128xf32>
    %cst_9 = arith.constant 0.000000e+00 : f32
    %16 = vector.broadcast %cst_9 : f32 to vector<8x128xf32>
    %17 = arith.select %5, %16, %15 : vector<8x128xi1>, vector<8x128xf32>
    %cst_10 = arith.constant 1.000000e+00 : f32
    %18 = vector.broadcast %cst_10 : f32 to vector<8x128xf32>
    %19 = arith.addf %17, %18 : vector<8x128xf32>
    %20 = arith.mulf %11, %19 : vector<8x128xf32>
    %cst_11 = arith.constant 1.000000e+00 : f32
    %21 = vector.broadcast %cst_11 : f32 to vector<8x128xf32>
    %22 = arith.subf %21, %11 : vector<8x128xf32>
    %23 = arith.maximumf %7, %14 : vector<8x128xf32>
    %24 = arith.mulf %22, %23 : vector<8x128xf32>
    %25 = arith.addf %20, %24 : vector<8x128xf32>
    %26 = arith.addi %6, %c0_i32_5 : i32
    %c14_i32 = arith.constant 14 : i32
    %27 = arith.cmpi slt, %26, %c14_i32 : i32
    %28 = arith.select %27, %25, %7 : vector<8x128xf32>
    %29 = arith.select %27, %7, %8 : vector<8x128xf32>
    %c1_i32_12 = arith.constant 1 : i32
    %30 = arith.index_cast %c1_i32_12 : i32 to index
    %c0_13 = arith.constant 0 : index
    %c0_14 = arith.constant 0 : index
    %31 = vector.load %arg1[%30, %c0_13, %c0_14] : memref<8x8x128xf32, #tpu.memory_space<vmem>>, vector<1x8x128xf32>
    %32 = vector.shape_cast %31 : vector<1x8x128xf32> to vector<8x128xf32>
    %c1_i32_15 = arith.constant 1 : i32
    %33 = tpu.dynamic_rotate %28 by %c1_i32_15 dim 1 : vector<8x128xf32>, i32 -> vector<8x128xf32>
    %cst_16 = arith.constant 0.000000e+00 : f32
    %34 = vector.broadcast %cst_16 : f32 to vector<8x128xf32>
    %35 = arith.select %5, %34, %33 : vector<8x128xi1>, vector<8x128xf32>
    %c1_i32_17 = arith.constant 1 : i32
    %36 = tpu.dynamic_rotate %29 by %c1_i32_17 dim 1 : vector<8x128xf32>, i32 -> vector<8x128xf32>
    %cst_18 = arith.constant 0.000000e+00 : f32
    %37 = vector.broadcast %cst_18 : f32 to vector<8x128xf32>
    %38 = arith.select %5, %37, %36 : vector<8x128xi1>, vector<8x128xf32>
    %cst_19 = arith.constant 1.000000e+00 : f32
    %39 = vector.broadcast %cst_19 : f32 to vector<8x128xf32>
    %40 = arith.addf %38, %39 : vector<8x128xf32>
    %41 = arith.mulf %32, %40 : vector<8x128xf32>
    %cst_20 = arith.constant 1.000000e+00 : f32
    %42 = vector.broadcast %cst_20 : f32 to vector<8x128xf32>
    %43 = arith.subf %42, %32 : vector<8x128xf32>
    %44 = arith.maximumf %28, %35 : vector<8x128xf32>
    %45 = arith.mulf %43, %44 : vector<8x128xf32>
    %46 = arith.addf %41, %45 : vector<8x128xf32>
    %47 = arith.addi %6, %c1_i32_12 : i32
    %c14_i32_21 = arith.constant 14 : i32
    %48 = arith.cmpi slt, %47, %c14_i32_21 : i32
    %49 = arith.select %48, %46, %28 : vector<8x128xf32>
    %50 = arith.select %48, %28, %29 : vector<8x128xf32>
    %c2_i32 = arith.constant 2 : i32
    %51 = arith.index_cast %c2_i32 : i32 to index
    %c0_22 = arith.constant 0 : index
    %c0_23 = arith.constant 0 : index
    %52 = vector.load %arg1[%51, %c0_22, %c0_23] : memref<8x8x128xf32, #tpu.memory_space<vmem>>, vector<1x8x128xf32>
    %53 = vector.shape_cast %52 : vector<1x8x128xf32> to vector<8x128xf32>
    %c1_i32_24 = arith.constant 1 : i32
    %54 = tpu.dynamic_rotate %49 by %c1_i32_24 dim 1 : vector<8x128xf32>, i32 -> vector<8x128xf32>
    %cst_25 = arith.constant 0.000000e+00 : f32
    %55 = vector.broadcast %cst_25 : f32 to vector<8x128xf32>
    %56 = arith.select %5, %55, %54 : vector<8x128xi1>, vector<8x128xf32>
    %c1_i32_26 = arith.constant 1 : i32
    %57 = tpu.dynamic_rotate %50 by %c1_i32_26 dim 1 : vector<8x128xf32>, i32 -> vector<8x128xf32>
    %cst_27 = arith.constant 0.000000e+00 : f32
    %58 = vector.broadcast %cst_27 : f32 to vector<8x128xf32>
    %59 = arith.select %5, %58, %57 : vector<8x128xi1>, vector<8x128xf32>
    %cst_28 = arith.constant 1.000000e+00 : f32
    %60 = vector.broadcast %cst_28 : f32 to vector<8x128xf32>
    %61 = arith.addf %59, %60 : vector<8x128xf32>
    %62 = arith.mulf %53, %61 : vector<8x128xf32>
    %cst_29 = arith.constant 1.000000e+00 : f32
    %63 = vector.broadcast %cst_29 : f32 to vector<8x128xf32>
    %64 = arith.subf %63, %53 : vector<8x128xf32>
    %65 = arith.maximumf %49, %56 : vector<8x128xf32>
    %66 = arith.mulf %64, %65 : vector<8x128xf32>
    %67 = arith.addf %62, %66 : vector<8x128xf32>
    %68 = arith.addi %6, %c2_i32 : i32
    %c14_i32_30 = arith.constant 14 : i32
    %69 = arith.cmpi slt, %68, %c14_i32_30 : i32
    %70 = arith.select %69, %67, %49 : vector<8x128xf32>
    %71 = arith.select %69, %49, %50 : vector<8x128xf32>
    %c3_i32 = arith.constant 3 : i32
    %72 = arith.index_cast %c3_i32 : i32 to index
    %c0_31 = arith.constant 0 : index
    %c0_32 = arith.constant 0 : index
    %73 = vector.load %arg1[%72, %c0_31, %c0_32] : memref<8x8x128xf32, #tpu.memory_space<vmem>>, vector<1x8x128xf32>
    %74 = vector.shape_cast %73 : vector<1x8x128xf32> to vector<8x128xf32>
    %c1_i32_33 = arith.constant 1 : i32
    %75 = tpu.dynamic_rotate %70 by %c1_i32_33 dim 1 : vector<8x128xf32>, i32 -> vector<8x128xf32>
    %cst_34 = arith.constant 0.000000e+00 : f32
    %76 = vector.broadcast %cst_34 : f32 to vector<8x128xf32>
    %77 = arith.select %5, %76, %75 : vector<8x128xi1>, vector<8x128xf32>
    %c1_i32_35 = arith.constant 1 : i32
    %78 = tpu.dynamic_rotate %71 by %c1_i32_35 dim 1 : vector<8x128xf32>, i32 -> vector<8x128xf32>
    %cst_36 = arith.constant 0.000000e+00 : f32
    %79 = vector.broadcast %cst_36 : f32 to vector<8x128xf32>
    %80 = arith.select %5, %79, %78 : vector<8x128xi1>, vector<8x128xf32>
    %cst_37 = arith.constant 1.000000e+00 : f32
    %81 = vector.broadcast %cst_37 : f32 to vector<8x128xf32>
    %82 = arith.addf %80, %81 : vector<8x128xf32>
    %83 = arith.mulf %74, %82 : vector<8x128xf32>
    %cst_38 = arith.constant 1.000000e+00 : f32
    %84 = vector.broadcast %cst_38 : f32 to vector<8x128xf32>
    %85 = arith.subf %84, %74 : vector<8x128xf32>
    %86 = arith.maximumf %70, %77 : vector<8x128xf32>
    %87 = arith.mulf %85, %86 : vector<8x128xf32>
    %88 = arith.addf %83, %87 : vector<8x128xf32>
    %89 = arith.addi %6, %c3_i32 : i32
    %c14_i32_39 = arith.constant 14 : i32
    %90 = arith.cmpi slt, %89, %c14_i32_39 : i32
    %91 = arith.select %90, %88, %70 : vector<8x128xf32>
    %92 = arith.select %90, %70, %71 : vector<8x128xf32>
    %c4_i32 = arith.constant 4 : i32
    %93 = arith.index_cast %c4_i32 : i32 to index
    %c0_40 = arith.constant 0 : index
    %c0_41 = arith.constant 0 : index
    %94 = vector.load %arg1[%93, %c0_40, %c0_41] : memref<8x8x128xf32, #tpu.memory_space<vmem>>, vector<1x8x128xf32>
    %95 = vector.shape_cast %94 : vector<1x8x128xf32> to vector<8x128xf32>
    %c1_i32_42 = arith.constant 1 : i32
    %96 = tpu.dynamic_rotate %91 by %c1_i32_42 dim 1 : vector<8x128xf32>, i32 -> vector<8x128xf32>
    %cst_43 = arith.constant 0.000000e+00 : f32
    %97 = vector.broadcast %cst_43 : f32 to vector<8x128xf32>
    %98 = arith.select %5, %97, %96 : vector<8x128xi1>, vector<8x128xf32>
    %c1_i32_44 = arith.constant 1 : i32
    %99 = tpu.dynamic_rotate %92 by %c1_i32_44 dim 1 : vector<8x128xf32>, i32 -> vector<8x128xf32>
    %cst_45 = arith.constant 0.000000e+00 : f32
    %100 = vector.broadcast %cst_45 : f32 to vector<8x128xf32>
    %101 = arith.select %5, %100, %99 : vector<8x128xi1>, vector<8x128xf32>
    %cst_46 = arith.constant 1.000000e+00 : f32
    %102 = vector.broadcast %cst_46 : f32 to vector<8x128xf32>
    %103 = arith.addf %101, %102 : vector<8x128xf32>
    %104 = arith.mulf %95, %103 : vector<8x128xf32>
    %cst_47 = arith.constant 1.000000e+00 : f32
    %105 = vector.broadcast %cst_47 : f32 to vector<8x128xf32>
    %106 = arith.subf %105, %95 : vector<8x128xf32>
    %107 = arith.maximumf %91, %98 : vector<8x128xf32>
    %108 = arith.mulf %106, %107 : vector<8x128xf32>
    %109 = arith.addf %104, %108 : vector<8x128xf32>
    %110 = arith.addi %6, %c4_i32 : i32
    %c14_i32_48 = arith.constant 14 : i32
    %111 = arith.cmpi slt, %110, %c14_i32_48 : i32
    %112 = arith.select %111, %109, %91 : vector<8x128xf32>
    %113 = arith.select %111, %91, %92 : vector<8x128xf32>
    %c5_i32 = arith.constant 5 : i32
    %114 = arith.index_cast %c5_i32 : i32 to index
    %c0_49 = arith.constant 0 : index
    %c0_50 = arith.constant 0 : index
    %115 = vector.load %arg1[%114, %c0_49, %c0_50] : memref<8x8x128xf32, #tpu.memory_space<vmem>>, vector<1x8x128xf32>
    %116 = vector.shape_cast %115 : vector<1x8x128xf32> to vector<8x128xf32>
    %c1_i32_51 = arith.constant 1 : i32
    %117 = tpu.dynamic_rotate %112 by %c1_i32_51 dim 1 : vector<8x128xf32>, i32 -> vector<8x128xf32>
    %cst_52 = arith.constant 0.000000e+00 : f32
    %118 = vector.broadcast %cst_52 : f32 to vector<8x128xf32>
    %119 = arith.select %5, %118, %117 : vector<8x128xi1>, vector<8x128xf32>
    %c1_i32_53 = arith.constant 1 : i32
    %120 = tpu.dynamic_rotate %113 by %c1_i32_53 dim 1 : vector<8x128xf32>, i32 -> vector<8x128xf32>
    %cst_54 = arith.constant 0.000000e+00 : f32
    %121 = vector.broadcast %cst_54 : f32 to vector<8x128xf32>
    %122 = arith.select %5, %121, %120 : vector<8x128xi1>, vector<8x128xf32>
    %cst_55 = arith.constant 1.000000e+00 : f32
    %123 = vector.broadcast %cst_55 : f32 to vector<8x128xf32>
    %124 = arith.addf %122, %123 : vector<8x128xf32>
    %125 = arith.mulf %116, %124 : vector<8x128xf32>
    %cst_56 = arith.constant 1.000000e+00 : f32
    %126 = vector.broadcast %cst_56 : f32 to vector<8x128xf32>
    %127 = arith.subf %126, %116 : vector<8x128xf32>
    %128 = arith.maximumf %112, %119 : vector<8x128xf32>
    %129 = arith.mulf %127, %128 : vector<8x128xf32>
    %130 = arith.addf %125, %129 : vector<8x128xf32>
    %131 = arith.addi %6, %c5_i32 : i32
    %c14_i32_57 = arith.constant 14 : i32
    %132 = arith.cmpi slt, %131, %c14_i32_57 : i32
    %133 = arith.select %132, %130, %112 : vector<8x128xf32>
    %134 = arith.select %132, %112, %113 : vector<8x128xf32>
    %c6_i32 = arith.constant 6 : i32
    %135 = arith.index_cast %c6_i32 : i32 to index
    %c0_58 = arith.constant 0 : index
    %c0_59 = arith.constant 0 : index
    %136 = vector.load %arg1[%135, %c0_58, %c0_59] : memref<8x8x128xf32, #tpu.memory_space<vmem>>, vector<1x8x128xf32>
    %137 = vector.shape_cast %136 : vector<1x8x128xf32> to vector<8x128xf32>
    %c1_i32_60 = arith.constant 1 : i32
    %138 = tpu.dynamic_rotate %133 by %c1_i32_60 dim 1 : vector<8x128xf32>, i32 -> vector<8x128xf32>
    %cst_61 = arith.constant 0.000000e+00 : f32
    %139 = vector.broadcast %cst_61 : f32 to vector<8x128xf32>
    %140 = arith.select %5, %139, %138 : vector<8x128xi1>, vector<8x128xf32>
    %c1_i32_62 = arith.constant 1 : i32
    %141 = tpu.dynamic_rotate %134 by %c1_i32_62 dim 1 : vector<8x128xf32>, i32 -> vector<8x128xf32>
    %cst_63 = arith.constant 0.000000e+00 : f32
    %142 = vector.broadcast %cst_63 : f32 to vector<8x128xf32>
    %143 = arith.select %5, %142, %141 : vector<8x128xi1>, vector<8x128xf32>
    %cst_64 = arith.constant 1.000000e+00 : f32
    %144 = vector.broadcast %cst_64 : f32 to vector<8x128xf32>
    %145 = arith.addf %143, %144 : vector<8x128xf32>
    %146 = arith.mulf %137, %145 : vector<8x128xf32>
    %cst_65 = arith.constant 1.000000e+00 : f32
    %147 = vector.broadcast %cst_65 : f32 to vector<8x128xf32>
    %148 = arith.subf %147, %137 : vector<8x128xf32>
    %149 = arith.maximumf %133, %140 : vector<8x128xf32>
    %150 = arith.mulf %148, %149 : vector<8x128xf32>
    %151 = arith.addf %146, %150 : vector<8x128xf32>
    %152 = arith.addi %6, %c6_i32 : i32
    %c14_i32_66 = arith.constant 14 : i32
    %153 = arith.cmpi slt, %152, %c14_i32_66 : i32
    %154 = arith.select %153, %151, %133 : vector<8x128xf32>
    %155 = arith.select %153, %133, %134 : vector<8x128xf32>
    %c7_i32 = arith.constant 7 : i32
    %156 = arith.index_cast %c7_i32 : i32 to index
    %c0_67 = arith.constant 0 : index
    %c0_68 = arith.constant 0 : index
    %157 = vector.load %arg1[%156, %c0_67, %c0_68] : memref<8x8x128xf32, #tpu.memory_space<vmem>>, vector<1x8x128xf32>
    %158 = vector.shape_cast %157 : vector<1x8x128xf32> to vector<8x128xf32>
    %c1_i32_69 = arith.constant 1 : i32
    %159 = tpu.dynamic_rotate %154 by %c1_i32_69 dim 1 : vector<8x128xf32>, i32 -> vector<8x128xf32>
    %cst_70 = arith.constant 0.000000e+00 : f32
    %160 = vector.broadcast %cst_70 : f32 to vector<8x128xf32>
    %161 = arith.select %5, %160, %159 : vector<8x128xi1>, vector<8x128xf32>
    %c1_i32_71 = arith.constant 1 : i32
    %162 = tpu.dynamic_rotate %155 by %c1_i32_71 dim 1 : vector<8x128xf32>, i32 -> vector<8x128xf32>
    %cst_72 = arith.constant 0.000000e+00 : f32
    %163 = vector.broadcast %cst_72 : f32 to vector<8x128xf32>
    %164 = arith.select %5, %163, %162 : vector<8x128xi1>, vector<8x128xf32>
    %cst_73 = arith.constant 1.000000e+00 : f32
    %165 = vector.broadcast %cst_73 : f32 to vector<8x128xf32>
    %166 = arith.addf %164, %165 : vector<8x128xf32>
    %167 = arith.mulf %158, %166 : vector<8x128xf32>
    %cst_74 = arith.constant 1.000000e+00 : f32
    %168 = vector.broadcast %cst_74 : f32 to vector<8x128xf32>
    %169 = arith.subf %168, %158 : vector<8x128xf32>
    %170 = arith.maximumf %154, %161 : vector<8x128xf32>
    %171 = arith.mulf %169, %170 : vector<8x128xf32>
    %172 = arith.addf %167, %171 : vector<8x128xf32>
    %173 = arith.addi %6, %c7_i32 : i32
    %c14_i32_75 = arith.constant 14 : i32
    %174 = arith.cmpi slt, %173, %c14_i32_75 : i32
    %175 = arith.select %174, %172, %154 : vector<8x128xf32>
    %176 = arith.select %174, %154, %155 : vector<8x128xf32>
    %c8_i32_76 = arith.constant 8 : i32
    %c0_77 = arith.constant 0 : index
    %c0_78 = arith.constant 0 : index
    %177 = vector.load %arg3[%c0_77, %c0_78] : memref<8x128xf32, #tpu.memory_space<vmem>>, vector<8x128xf32>
    tpu.vector_store %arg3[%c0_77, %c0_78], %175 {strides = array<i32>} : memref<8x128xf32, #tpu.memory_space<vmem>>, vector<8x128xf32>,
    %c0_79 = arith.constant 0 : index
    %c0_80 = arith.constant 0 : index
    %178 = vector.load %arg4[%c0_79, %c0_80] : memref<8x128xf32, #tpu.memory_space<vmem>>, vector<8x128xf32>
    tpu.vector_store %arg4[%c0_79, %c0_80], %176 {strides = array<i32>} : memref<8x128xf32, #tpu.memory_space<vmem>>, vector<8x128xf32>,
    %c1_i32_81 = arith.constant 1 : i32
    %179 = arith.cmpi eq, %arg0, %c1_i32_81 : i32
    %180 = arith.extui %179 : i1 to i32
    %c0_i32_82 = arith.constant 0 : i32
    %181 = arith.cmpi ne, %180, %c0_i32_82 : i32
    scf.if %181 {
      %cst_83 = arith.constant 1.000000e+02 : f32
      %182 = vector.broadcast %cst_83 : f32 to vector<8x128xf32>
      %183 = arith.minimumf %175, %182 : vector<8x128xf32>
      %c0_84 = arith.constant 0 : index
      %c0_85 = arith.constant 0 : index
      %184 = vector.load %arg2[%c0_84, %c0_85] : memref<8x128xf32, #tpu.memory_space<vmem>>, vector<8x128xf32>
      tpu.vector_store %arg2[%c0_84, %c0_85], %183 {strides = array<i32>} : memref<8x128xf32, #tpu.memory_space<vmem>>, vector<8x128xf32>,
    } else {
    }
    return
  }
  func.func @transform_0(%arg0: i32) -> (i32, i32, i32) {
    %c0_i32 = arith.constant 0 : i32
    %c0_i32_0 = arith.constant 0 : i32
    %c0_i32_1 = arith.constant 0 : i32
    return %arg0, %c0_i32, %c0_i32_0 : i32, i32, i32
  }
  func.func @transform_1(%arg0: i32) -> (i32, i32) {
    %c0_i32 = arith.constant 0 : i32
    %c0_i32_0 = arith.constant 0 : i32
    %c0_i32_1 = arith.constant 0 : i32
    return %c0_i32, %c0_i32_0 : i32, i32
  }
}

</mosaic_0001>

<llo_original>
// kernel: run.2
$region0: #{run.2}
  #allocation0 [shape = 'u32[]', space=smem, size = 0x4, offset = 0x4, fixed_abs, tag = 'smem constant byte address 0x4 - core index']
  #allocation1 [shape = 'u32[72,128]{1,0:T(1,128)}', space=vmem, size = 0x9000, scoped, tag = 'internal scratch']
  %s0 = inlined_call_operand.hbm [shape: f32[2,8,32], index: 0, kind: input, shape index: {}]
  %s1 = inlined_call_operand.hbm [shape: s32[2,1,128], index: 1, kind: input, shape index: {}]
  %s2 = inlined_call_operand.vmem [shape: f32[2,8,128], index: 2, kind: output, shape index: {}]
  %s3 = sld [smem:[#allocation0]]
  $region49: #{run.2} parent=0
    _
  %s5 = ssub.s32 1, %s3
  %s6 = scalar_select 0, %s5, %s3
  $region1: #{run.2} parent=0
    #allocation2 [shape = 'u8[8192]{0}', space=vmem, size = 0x2000, scoped, tag = 'input window, operand 0']
    #allocation3 [shape = 's32[2]{0}', space=sflag, size = 0x8, scoped, tag = 'scoped memory for run.2']
    #allocation4 [shape = 'u8[1024]{0}', space=vmem, size = 0x400, scoped, tag = 'input window, operand 1']
    #allocation5 [shape = 's32[2]{0}', space=sflag, size = 0x8, scoped, tag = 'scoped memory for run.2']
    %7 = vsyncpa [#allocation3], 0
    %s8 = scalar_lea.sflag [#allocation3], 1
    %9 = vsyncpa %s8, 0
    %10 = vsyncpa [#allocation5], 0
    %s11 = scalar_lea.sflag [#allocation5], 1
    %12 = vsyncpa %s11, 0
    loop: start=0, step=1, limit=4
    $region2: #{run.2} parent=1 // loop_pre_header
      _
    $region3: #{run.2} parent=1 // loop_header
      %s14 = sphi 0, %s18
      %p15 = scmp.ge.s32.totalorder %s14, 4
      %s21 = sphi 0, %s33
      %s22 = sphi 0, %s29
      %s23 = sphi 0, %s21
      %s24 = sphi 0, %s22
      %s25 = sphi 0, %s23
      %s26 = sphi 0, %s24
      %s38 = sphi 0, %s40
      %s41 = sphi 0, %s38
      %s42 = sphi 0, %s41
      %s58 = sphi 0, %s42
      %s64 = sphi 0, %s66
      %s67 = sphi 0, %s64
      %s68 = sphi 0, %s67
      %s84 = sphi 0, %s68
      %s92 = sphi 0, %s94
      %s95 = sphi 0, %s92
      %s96 = sphi 0, %s95
      %s112 = sphi 0, %s96
    $region4: #{run.2} parent=1 // loop_header_branch
      %17 = sbr.rel (%p15) target = $region8
    $region5: #{run.2} parent=1 // loop_body
      %s19 = ssub.s32 %s14, 1
      %s20 = ssub.s32 %s14, 2
      %s27 = sadd.s32 1, %s22
      %p28 = scmp.ge.s32.totalorder %s27, 1
      %s29 = scalar_select %p28, 0, %s27
      %s30 = sadd.s32 1, %s21
      %s31 = scalar_select %p28, %s30, %s21
      %p32 = scmp.ge.s32.totalorder %s31, 2
      %s33 = scalar_select %p32, 0, %s31
      %s34 = ssub.s32 %s21, %s33
      %s35 = ssub.s32 %s22, %s29
      %s36 = sor.u32 %s34, %s35
      %p37 = scmp.eq.s32.totalorder %s36, 0
      %s39 = sadd.s32 %s38, 1
      %s40 = scalar_select %p37, %s38, %s39
      %p43 = pneg %p37
      %p44 = scmp.eq.s32.totalorder %s14, 1
      %p45 = por %p43, %p44
      %p46 = scmp.ne.s32.totalorder %s38, %s41
      %p47 = scmp.eq.s32.totalorder %s14, 0
      %p48 = por %p46, %p47
      %p49 = scmp.ne.s32.totalorder %s38, %s41
      %p50 = scmp.eq.s32.totalorder %s19, 1
      %p51 = por %p49, %p50
      %p52 = scmp.ne.s32.totalorder %s41, %s42
      %p53 = scmp.eq.s32.totalorder %s19, 0
      %p54 = por %p52, %p53
      %p55 = scmp.ne.s32.totalorder %s41, %s42
      %p56 = scmp.eq.s32.totalorder %s20, 1
      %p57 = por %p55, %p56
      %p59 = scmp.ne.s32.totalorder %s42, %s58
      %p60 = scmp.eq.s32.totalorder %s20, 0
      %p61 = por %p59, %p60
      %s62 = ssub.s32 %s21, %s33
      %p63 = scmp.eq.s32.totalorder %s62, 0
      %s65 = sadd.s32 %s64, 1
      %s66 = scalar_select %p63, %s64, %s65
      %p69 = pneg %p63
      %p70 = scmp.eq.s32.totalorder %s14, 1
      %p71 = por %p69, %p70
      %p72 = scmp.ne.s32.totalorder %s64, %s67
      %p73 = scmp.eq.s32.totalorder %s14, 0
      %p74 = por %p72, %p73
      %p75 = scmp.ne.s32.totalorder %s64, %s67
      %p76 = scmp.eq.s32.totalorder %s19, 1
      %p77 = por %p75, %p76
      %p78 = scmp.ne.s32.totalorder %s67, %s68
      %p79 = scmp.eq.s32.totalorder %s19, 0
      %p80 = por %p78, %p79
      %p81 = scmp.ne.s32.totalorder %s67, %s68
      %p82 = scmp.eq.s32.totalorder %s20, 1
      %p83 = por %p81, %p82
      %p85 = scmp.ne.s32.totalorder %s68, %s84
      %p86 = scmp.eq.s32.totalorder %s20, 0
      %p87 = por %p85, %p86
      %s88 = ssub.s32 %s21, %s33
      %s89 = ssub.s32 %s22, %s29
      %s90 = sor.u32 %s88, %s89
      %p91 = scmp.eq.s32.totalorder %s90, 0
      %s93 = sadd.s32 %s92, 1
      %s94 = scalar_select %p91, %s92, %s93
      %p97 = pneg %p91
      %p98 = scmp.eq.s32.totalorder %s14, 1
      %p99 = por %p97, %p98
      %p100 = scmp.ne.s32.totalorder %s92, %s95
      %p101 = scmp.eq.s32.totalorder %s14, 0
      %p102 = por %p100, %p101
      %p103 = scmp.ne.s32.totalorder %s92, %s95
      %p104 = scmp.eq.s32.totalorder %s19, 1
      %p105 = por %p103, %p104
      %p106 = scmp.ne.s32.totalorder %s95, %s96
      %p107 = scmp.eq.s32.totalorder %s19, 0
      %p108 = por %p106, %p107
      %p109 = scmp.ne.s32.totalorder %s95, %s96
      %p110 = scmp.eq.s32.totalorder %s20, 1
      %p111 = por %p109, %p110
      %p113 = scmp.ne.s32.totalorder %s96, %s112
      %p114 = scmp.eq.s32.totalorder %s20, 0
      %p115 = por %p113, %p114
      %p116 = scmp.le.s32.totalorder 1, %s14
      %p117 = scmp.lt.s32.totalorder %s14, 3
      %p118 = pnand %p116, %p117
      %p119 = pneg %p118
      // Predicated region
      $region9: #{run.2} parent=5 // pred_check
        _
      $region10: #{run.2} parent=5 // pred_check_branch
        %121 = sbr.rel (%p118) target = $region12
      $region11: #{run.2} parent=5 // pred_region
        %s122 = ssub.s32 %s14, 1
      $region12: #{run.2} parent=5 // pred_fallthru
        _
      %p123 = scmp.lt.s32.totalorder %s14, 2
      // Predicated region
      $region13: #{run.2} parent=5 // pred_check
        %p124 = pneg %p123
      $region14: #{run.2} parent=5 // pred_check_branch
        %126 = sbr.rel (%p124) target = $region16
      $region15: #{run.2} parent=5 // pred_region
        // Predicated region
        $region17: #{run.2} parent=15 // pred_check
          %p127 = pneg %p48
        $region18: #{run.2} parent=15 // pred_check_branch
          %129 = sbr.rel (%p127) target = $region20
        $region19: #{run.2} parent=15 // pred_region
          %s130 = sand.u32 %s38, 1
          %s131 = scalar_lea.sflag [#allocation3], %s130
          %s132 = sand.u32 %s38, 1
          %s133 = smul.addr %s132, 8
          %s134 = scalar_lea.vmem [#allocation2], %s133
          %136 = vsyncadd %s131, 0
          %s137 = sadd.s32 %s22, %s21
          %s138 = smul.addr %s137, 8
          %s139 = scalar_lea.hbm %s0, %s138
          %s141 = sshll.u32 %s139, 4
          %s142 = int_to_ptr.hbm [resolvable:$true] %s141
          %s143 = sshll.u32 %s134, 4
          %s144 = int_to_ptr.vmem [resolvable:$true] %s143
          %146 = dma.hbm_to_vmem [thread:$0]  %s142, 128, %s144, %s131
        $region20: #{run.2} parent=15 // pred_fallthru
          _
        // Predicated region
        $region21: #{run.2} parent=15 // pred_check
          %p147 = pneg %p74
        $region22: #{run.2} parent=15 // pred_check_branch
          %149 = sbr.rel (%p147) target = $region24
        $region23: #{run.2} parent=15 // pred_region
          %s150 = sand.u32 %s64, 1
          %s151 = scalar_lea.sflag [#allocation5], %s150
          %s152 = sand.u32 %s64, 1
          %s153 = scalar_lea.vmem [#allocation4], %s152
          %155 = vsyncadd %s151, 0
          %s156 = scalar_lea.hbm %s1, %s21
          %s158 = sshll.u32 %s156, 4
          %s159 = int_to_ptr.hbm [resolvable:$true] %s158
          %s160 = sshll.u32 %s153, 4
          %s161 = int_to_ptr.vmem [resolvable:$true] %s160
          %163 = dma.hbm_to_vmem [thread:$0]  %s159, 16, %s161, %s151
        $region24: #{run.2} parent=15 // pred_fallthru
          _
      $region16: #{run.2} parent=5 // pred_fallthru
        _
      %p164 = scmp.le.s32.totalorder 1, %s14
      %p165 = scmp.lt.s32.totalorder %s14, 3
      %p166 = pnand %p164, %p165
      %p167 = pneg %p166
      // Predicated region
      $region25: #{run.2} parent=5 // pred_check
        _
      $region26: #{run.2} parent=5 // pred_check_branch
        %169 = sbr.rel (%p166) target = $region28
      $region27: #{run.2} parent=5 // pred_region
        %s170 = ssub.s32 %s14, 1
        %s171 = sand.u32 %s41, 1
        %s172 = scalar_lea.sflag [#allocation3], %s171
        %s173 = sand.u32 %s41, 1
        %s174 = smul.addr %s173, 8
        %s175 = scalar_lea.vmem [#allocation2], %s174
        // Predicated region
        $region29: #{run.2} parent=27 // pred_check
          %p176 = pneg %p54
        $region30: #{run.2} parent=27 // pred_check_branch
          %178 = sbr.rel (%p176) target = $region32
        $region31: #{run.2} parent=27 // pred_region
          %180 = dma.done %s172, 128
        $region32: #{run.2} parent=27 // pred_fallthru
          _
        %s181 = sand.u32 %s67, 1
        %s182 = scalar_lea.sflag [#allocation5], %s181
        %s183 = sand.u32 %s67, 1
        %s184 = scalar_lea.vmem [#allocation4], %s183
        // Predicated region
        $region33: #{run.2} parent=27 // pred_check
          %p185 = pneg %p80
        $region34: #{run.2} parent=27 // pred_check_branch
          %187 = sbr.rel (%p185) target = $region36
        $region35: #{run.2} parent=27 // pred_region
          %189 = dma.done %s182, 16
        $region36: #{run.2} parent=27 // pred_fallthru
          _
        %s190 = sand.u32 %s41, 1
        %s191 = scalar_lea.sflag [#allocation3], %s190
        %s192 = sand.u32 %s41, 1
        %s193 = smul.addr %s192, 8
        %s194 = scalar_lea.vmem [#allocation2], %s193
        %p195 = pneg %p54
        %p196 = pneg %p51
        %s197 = sand.u32 %s67, 1
        %s198 = scalar_lea.sflag [#allocation5], %s197
        %s199 = sand.u32 %s67, 1
        %s200 = scalar_lea.vmem [#allocation4], %s199
        %p201 = pneg %p80
        %p202 = pneg %p77
        %p203 = pneg %p108
        %p204 = pneg %p105
        %p205 = scmp.lt.s32.totalorder %s23, 1
        %s206 = scalar_select %p205, %s23, 1
        %p207 = scmp.lt.s32.totalorder %s24, 0
        %s208 = scalar_select %p207, %s24, 0
        %s209 = sadd.s32 %s208, %s206
        %s210 = smul.addr %s209, 8
        %s211 = scalar_lea.vmem %s2, %s210
        %p212 = scmp.lt.s32.totalorder %s23, 1
        %s213 = scalar_select %p212, %s23, 1
        %p214 = scmp.lt.s32.totalorder %s24, 0
        %s215 = scalar_select %p214, %s24, 0
        %s216 = sadd.s32 %s215, %s213
        %s217 = smul.addr %s216, 8
        %s218 = scalar_lea.vmem %s2, %s217
        %v220 = vld [vmem:[%s175] sm:$0xff]
        %vm221 = vcmask 261120
        %v222 = vsel %vm221, %v220, -inf
        %223 = vmax.xlane.f32.xlu0 %v222
        %v224 = vpop.xlane.xlu0 %223
        %v225 = vsub.f32 %v220, %v224
        %v226 = vmul.f32 %v225, 1.442695
        %v227 = vpow.pop %v226
        %v228 = vsel %vm221, %v227, 0.0
        %229 = vadd.xlane.f32.xlu0 %v228
        %v230 = vpop.xlane.xlu0 %229
        %v231 = vld [vmem:[%s184] sm:$0x1]
        %v232 = vlaneseq
        %v233 = vshrl.u32 %v232, 7
        %v234 = vadd.s32 %v233, 8
        %v235 = vadd.s32 %v233, 16
        %v236 = vadd.s32 %v233, 24
        %v237 = vperm.slane %v231, 0
        %vm238 = vcmp.eq.s32.totalorder %v233, %v237
        %vm239 = vcmp.eq.s32.totalorder %v234, %v237
        %vm240 = vcmp.eq.s32.totalorder %v235, %v237
        %vm241 = vcmp.eq.s32.totalorder %v236, %v237
        %v242 = vsel %vm238, 1, 0
        %v243 = vsel %vm239, 1, 0
        %v244 = vsel %vm240, 1, 0
        %v245 = vsel %vm241, 1, 0
        %v246 = vcvt.s32.f32 %v242
        %v247 = vcvt.s32.f32 %v243
        %v248 = vcvt.s32.f32 %v244
        %v249 = vcvt.s32.f32 %v245
        %v250 = vpack.c.bf16 %v247, %v246
        %v251 = vpack.c.bf16 %v249, %v248
        %v252 = vpack.c.bf16 %v227, %v227
        %v253 = vunpack.c.l.bf16 %v252
        %v254 = vsub.f32 %v227, %v253
        %v255 = vpack.c.bf16 %v254, %v254
        %v257 = vsel %vm221, %v255, 0
        %259 = vmatpush.bf16.msra.mxu0 0
        %260 = vmatpush.bf16.msra.mxu0 0
        %261 = vmatpush.bf16.msra.mxu0 0
        %262 = vmatpush.bf16.msra.mxu0 0
        %263 = vmatpush.bf16.msra.mxu0 0
        %264 = vmatpush.bf16.msra.mxu0 0
        %265 = vmatpush.bf16.msra.mxu0 %v251
        %266 = vmatpush.bf16.msra.mxu0 %v250
        %267 = vmatmul.bf16.gmra.mxu0 %v257
        %v268 = vpop.f32.mrf.mxu0
        %v269 = vadd.f32 0.0, %v268
        %v270 = vpop.f32.mrf.mxu0
        %271 = vdwg.mxu0
        %v273 = vsel %vm221, %v252, 0
        %275 = vmatpush.bf16.msra.mxu0 0
        %276 = vmatpush.bf16.msra.mxu0 0
        %277 = vmatpush.bf16.msra.mxu0 0
        %278 = vmatpush.bf16.msra.mxu0 0
        %279 = vmatpush.bf16.msra.mxu0 0
        %280 = vmatpush.bf16.msra.mxu0 0
        %281 = vmatpush.bf16.msra.mxu0 %v251
        %282 = vmatpush.bf16.msra.mxu0 %v250
        %283 = vmatmul.bf16.gmra.mxu0 %v273
        %v284 = vpop.f32.mrf.mxu0
        %v285 = vadd.f32 %v269, %v284
        %v286 = vpop.f32.mrf.mxu0
        %287 = vdwg.mxu0
        %v288 = vrcp.pop %v230
        %v289 = vmul.f32 %v230, %v288
        %v290 = vsub.f32 1.0, %v289
        %v291 = vmul.f32 %v288, %v290
        %v292 = vadd.f32 %v288, %v291
        %vm293 = vweird.f32 %v230
        %vm294 = vweird.f32 %v288
        %vm295 = vmor %vm293, %vm294
        %v296 = vsel %vm295, %v288, %v292
        %v297 = vand.u32 2147483647, %v230
        %vm298 = vcmp.eq.f32.partialorder %v297, 8.507059e+37
        %v299 = vand.u32 %v230, 2147483648
        %v300 = vor.u32 1.1754944e-38, %v299
        %v301 = vsel %vm298, %v300, %v296
        %v302 = vmul.f32 1.0, %v301
        %v303 = vmul.f32 %v285, %v302
        %304 = vst [vmem:[%s218] sm:$0xff] %v303
        %p305 = scmp.lt.s32.totalorder %s23, 1
        %s306 = scalar_select %p305, %s23, 1
        %p307 = scmp.lt.s32.totalorder %s24, 0
        %s308 = scalar_select %p307, %s24, 0
        %s309 = sadd.s32 %s308, %s306
        %s310 = smul.addr %s309, 8
        %s311 = scalar_lea.vmem %s2, %s310
        // Predicated region
        $region37: #{run.2} parent=27 // pred_check
          %p312 = pneg %p105
        $region38: #{run.2} parent=27 // pred_check_branch
          %314 = sbr.rel (%p312) target = $region40
        $region39: #{run.2} parent=27 // pred_region
          _
        $region40: #{run.2} parent=27 // pred_fallthru
          _
      $region28: #{run.2} parent=5 // pred_fallthru
        _
      %p315 = scmp.le.s32.totalorder 2, %s14
      // Predicated region
      $region41: #{run.2} parent=5 // pred_check
        %p316 = pneg %p315
      $region42: #{run.2} parent=5 // pred_check_branch
        %318 = sbr.rel (%p316) target = $region44
      $region43: #{run.2} parent=5 // pred_region
        %s319 = ssub.s32 %s14, 2
        // Predicated region
        $region45: #{run.2} parent=43 // pred_check
          %p320 = pneg %p111
        $region46: #{run.2} parent=43 // pred_check_branch
          %322 = sbr.rel (%p320) target = $region48
        $region47: #{run.2} parent=43 // pred_region
          %p323 = scmp.lt.s32.totalorder %s25, 1
          %s324 = scalar_select %p323, %s25, 1
          %p325 = scmp.lt.s32.totalorder %s26, 0
          %s326 = scalar_select %p325, %s26, 0
          %s327 = sadd.s32 %s326, %s324
          %s328 = smul.addr %s327, 8
          %s329 = scalar_lea.vmem %s2, %s328
        $region48: #{run.2} parent=43 // pred_fallthru
          _
      $region44: #{run.2} parent=5 // pred_fallthru
        _
    $region6: #{run.2} parent=1 // loop_footer
      %s18 = sadd.s32 1, %s14
    $region7: #{run.2} parent=1 // loop_footer_branch
      %13 = sbr.rel target = $region3
    $region8: #{run.2} parent=1 // loop_exit
      _
    %330 = vsyncpa [#allocation3], 1
    %s331 = scalar_lea.sflag [#allocation3], 1
    %332 = vsyncpa %s331, 1
    %333 = vsyncpa [#allocation5], 1
    %s334 = scalar_lea.sflag [#allocation5], 1
    %335 = vsyncpa %s334, 1

// kernel: run.3
$region0: #{run.3}
  #allocation0 [shape = 'u32[]', space=smem, size = 0x4, offset = 0x4, fixed_abs, tag = 'smem constant byte address 0x4 - core index']
  #allocation1 [shape = 'u32[72,128]{1,0:T(1,128)}', space=vmem, size = 0x9000, scoped, tag = 'internal scratch']
  #allocation2 [shape = 'f32[8,128]{1,0:T(8,128)}', space=vmem, size = 0x1000, scoped, tag = 'scratch operand']
  #allocation3 [shape = 'f32[8,128]{1,0:T(8,128)}', space=vmem, size = 0x1000, scoped, tag = 'scratch operand']
  %s0 = inlined_call_operand.vmem [shape: f32[16,8,128], index: 0, kind: input, shape index: {}]
  %s1 = inlined_call_operand.vmem [shape: f32[8,128], index: 1, kind: output, shape index: {}]
  %s2 = sld [smem:[#allocation0]]
  $region45: #{run.3} parent=0
    _
  %s4 = ssub.s32 1, %s2
  %s5 = scalar_select 0, %s4, %s2
  loop: start=0, step=1, limit=4
  $region2: #{run.3} parent=0 // loop_pre_header
    _
  $region3: #{run.3} parent=0 // loop_header
    %s7 = sphi 0, %s11
    %p8 = scmp.ge.s32.totalorder %s7, 4
    %s17 = sphi 0, %s19
    %s20 = sphi 0, %s17
    %s21 = sphi 0, %s20
    %s37 = sphi 0, %s21
    %s41 = sphi 0, %s41
    %s43 = sphi 0, %s41
    %s44 = sphi 0, %s43
    %s58 = sphi 0, %s44
  $region4: #{run.3} parent=0 // loop_header_branch
    %10 = sbr.rel (%p8) target = $region8
  $region5: #{run.3} parent=0 // loop_body
    %s12 = ssub.s32 %s7, 1
    %s13 = ssub.s32 %s7, 2
    %s14 = sadd.s32 %s7, 1
    %s15 = ssub.s32 %s7, %s14
    %p16 = scmp.eq.s32.totalorder %s15, 0
    %s18 = sadd.s32 %s17, 1
    %s19 = scalar_select %p16, %s17, %s18
    %p22 = pneg %p16
    %p23 = scmp.eq.s32.totalorder %s7, 1
    %p24 = por %p22, %p23
    %p25 = scmp.ne.s32.totalorder %s17, %s20
    %p26 = scmp.eq.s32.totalorder %s7, 0
    %p27 = por %p25, %p26
    %p28 = scmp.ne.s32.totalorder %s17, %s20
    %p29 = scmp.eq.s32.totalorder %s12, 1
    %p30 = por %p28, %p29
    %p31 = scmp.ne.s32.totalorder %s20, %s21
    %p32 = scmp.eq.s32.totalorder %s12, 0
    %p33 = por %p31, %p32
    %p34 = scmp.ne.s32.totalorder %s20, %s21
    %p35 = scmp.eq.s32.totalorder %s13, 1
    %p36 = por %p34, %p35
    %p38 = scmp.ne.s32.totalorder %s21, %s37
    %p39 = scmp.eq.s32.totalorder %s13, 0
    %p40 = por %p38, %p39
    %s42 = sadd.s32 %s41, 1
    %p45 = scmp.eq.s32.totalorder %s7, 1
    %p46 = scmp.ne.s32.totalorder %s41, %s43
    %p47 = scmp.eq.s32.totalorder %s7, 0
    %p48 = por %p46, %p47
    %p49 = scmp.ne.s32.totalorder %s41, %s43
    %p50 = scmp.eq.s32.totalorder %s12, 1
    %p51 = por %p49, %p50
    %p52 = scmp.ne.s32.totalorder %s43, %s44
    %p53 = scmp.eq.s32.totalorder %s12, 0
    %p54 = por %p52, %p53
    %p55 = scmp.ne.s32.totalorder %s43, %s44
    %p56 = scmp.eq.s32.totalorder %s13, 1
    %p57 = por %p55, %p56
    %p59 = scmp.ne.s32.totalorder %s44, %s58
    %p60 = scmp.eq.s32.totalorder %s13, 0
    %p61 = por %p59, %p60
    %p62 = scmp.le.s32.totalorder 1, %s7
    %p63 = scmp.lt.s32.totalorder %s7, 3
    %p64 = pnand %p62, %p63
    %p65 = pneg %p64
    // Predicated region
    $region9: #{run.3} parent=5 // pred_check
      _
    $region10: #{run.3} parent=5 // pred_check_branch
      %67 = sbr.rel (%p64) target = $region12
    $region11: #{run.3} parent=5 // pred_region
      %s68 = ssub.s32 %s7, 1
    $region12: #{run.3} parent=5 // pred_fallthru
      _
    %p69 = scmp.lt.s32.totalorder %s7, 2
    // Predicated region
    $region13: #{run.3} parent=5 // pred_check
      %p70 = pneg %p69
    $region14: #{run.3} parent=5 // pred_check_branch
      %72 = sbr.rel (%p70) target = $region16
    $region15: #{run.3} parent=5 // pred_region
      // Predicated region
      $region17: #{run.3} parent=15 // pred_check
        %p73 = pneg %p27
      $region18: #{run.3} parent=15 // pred_check_branch
        %75 = sbr.rel (%p73) target = $region20
      $region19: #{run.3} parent=15 // pred_region
        %s76 = smul.u32 8, %s7
        %p77 = scmp.lt.s32.totalorder %s76, 15
        %s78 = scalar_select %p77, %s76, 15
        %s79 = smul.addr %s78, 8
        %s80 = scalar_lea.vmem %s0, %s79
        %s81 = smul.u32 8, %s7
      $region20: #{run.3} parent=15 // pred_fallthru
        _
    $region16: #{run.3} parent=5 // pred_fallthru
      _
    %p82 = scmp.le.s32.totalorder 1, %s7
    %p83 = scmp.lt.s32.totalorder %s7, 3
    %p84 = pnand %p82, %p83
    %p85 = pneg %p84
    // Predicated region
    $region21: #{run.3} parent=5 // pred_check
      _
    $region22: #{run.3} parent=5 // pred_check_branch
      %87 = sbr.rel (%p84) target = $region24
    $region23: #{run.3} parent=5 // pred_region
      %s88 = ssub.s32 %s7, 1
      %s89 = smul.u32 8, %s12
      %p90 = scmp.lt.s32.totalorder %s89, 15
      %s91 = scalar_select %p90, %s89, 15
      %s92 = smul.addr %s91, 8
      %s93 = scalar_lea.vmem %s0, %s92
      %p94 = pneg %p33
      %p95 = pneg %p30
      %p96 = pneg %p54
      %p97 = pneg %p51
      %s98 = smul.u32 8, %s12
      %p99 = scmp.lt.s32.totalorder %s98, 15
      %s100 = scalar_select %p99, %s98, 15
      %s101 = smul.addr %s100, 8
      %s102 = scalar_lea.vmem %s0, %s101
      %s103 = smul.u32 8, %s12
      %p104 = scmp.eq.s32.totalorder %s12, 0
      // Predicated region
      $region25: #{run.3} parent=23 // pred_check
        %p105 = pneg %p104
      $region26: #{run.3} parent=23 // pred_check_branch
        %107 = sbr.rel (%p105) target = $region28
      $region27: #{run.3} parent=23 // pred_region
        %108 = vst [vmem:[#allocation2] sm:$0xff] 0.0
        %109 = vst [vmem:[#allocation3] sm:$0xff] 0.0
      $region28: #{run.3} parent=23 // pred_fallthru
        _
      %v110 = vlaneseq
      %v111 = vand.u32 %v110, 127
      %vm112 = vcmp.eq.s32.totalorder %v111, 0
      %s113 = smul.u32 %s12, 8
      %v114 = vld [vmem:[#allocation2] sm:$0xff]
      %v115 = vld [vmem:[#allocation3] sm:$0xff]
      %v116 = vld [vmem:[%s102] sm:$0xff]
      %117 = vrot.lane.b32.xlu0 %v114, 1
      %v118 = vpop.permute.xlu0 %117
      %v119 = vsel %vm112, 0.0, %v118
      %120 = vrot.lane.b32.xlu0 %v115, 1
      %v121 = vpop.permute.xlu0 %120
      %v122 = vsel %vm112, 0.0, %v121
      %v123 = vadd.f32 %v122, 1.0
      %v124 = vmul.f32 %v116, %v123
      %v125 = vsub.f32 1.0, %v116
      %v126 = vmax.f32 %v114, %v119
      %v127 = vmul.f32 %v125, %v126
      %v128 = vadd.f32 %v124, %v127
      %p129 = scmp.lt.s32.totalorder %s113, 14
      %s130 = scalar_select %p129, 1, 0
      %v131 = vstv %s130
      %vm132 = vcmp.eq.s32.totalorder %v131, 1
      %v133 = vsel %vm132, %v128, %v114
      %v134 = vsel %vm132, %v114, %v115
      %s135 = scalar_lea.vmem %s102, 8
      %v136 = vld [vmem:[%s135] sm:$0xff]
      %137 = vrot.lane.b32.xlu0 %v133, 1
      %v138 = vpop.permute.xlu0 %137
      %v139 = vsel %vm112, 0.0, %v138
      %140 = vrot.lane.b32.xlu0 %v134, 1
      %v141 = vpop.permute.xlu0 %140
      %v142 = vsel %vm112, 0.0, %v141
      %v143 = vadd.f32 %v142, 1.0
      %v144 = vmul.f32 %v136, %v143
      %v145 = vsub.f32 1.0, %v136
      %v146 = vmax.f32 %v133, %v139
      %v147 = vmul.f32 %v145, %v146
      %v148 = vadd.f32 %v144, %v147
      %s149 = sadd.s32 %s113, 1
      %p150 = scmp.lt.s32.totalorder %s149, 14
      %s151 = scalar_select %p150, 1, 0
      %v152 = vstv %s151
      %vm153 = vcmp.eq.s32.totalorder %v152, 1
      %v154 = vsel %vm153, %v148, %v133
      %v155 = vsel %vm153, %v133, %v134
      %s156 = scalar_lea.vmem %s102, 16
      %v157 = vld [vmem:[%s156] sm:$0xff]
      %158 = vrot.lane.b32.xlu0 %v154, 1
      %v159 = vpop.permute.xlu0 %158
      %v160 = vsel %vm112, 0.0, %v159
      %161 = vrot.lane.b32.xlu0 %v155, 1
      %v162 = vpop.permute.xlu0 %161
      %v163 = vsel %vm112, 0.0, %v162
      %v164 = vadd.f32 %v163, 1.0
      %v165 = vmul.f32 %v157, %v164
      %v166 = vsub.f32 1.0, %v157
      %v167 = vmax.f32 %v154, %v160
      %v168 = vmul.f32 %v166, %v167
      %v169 = vadd.f32 %v165, %v168
      %s170 = sadd.s32 %s113, 2
      %p171 = scmp.lt.s32.totalorder %s170, 14
      %s172 = scalar_select %p171, 1, 0
      %v173 = vstv %s172
      %vm174 = vcmp.eq.s32.totalorder %v173, 1
      %v175 = vsel %vm174, %v169, %v154
      %v176 = vsel %vm174, %v154, %v155
      %s177 = scalar_lea.vmem %s102, 24
      %v178 = vld [vmem:[%s177] sm:$0xff]
      %179 = vrot.lane.b32.xlu0 %v175, 1
      %v180 = vpop.permute.xlu0 %179
      %v181 = vsel %vm112, 0.0, %v180
      %182 = vrot.lane.b32.xlu0 %v176, 1
      %v183 = vpop.permute.xlu0 %182
      %v184 = vsel %vm112, 0.0, %v183
      %v185 = vadd.f32 %v184, 1.0
      %v186 = vmul.f32 %v178, %v185
      %v187 = vsub.f32 1.0, %v178
      %v188 = vmax.f32 %v175, %v181
      %v189 = vmul.f32 %v187, %v188
      %v190 = vadd.f32 %v186, %v189
      %s191 = sadd.s32 %s113, 3
      %p192 = scmp.lt.s32.totalorder %s191, 14
      %s193 = scalar_select %p192, 1, 0
      %v194 = vstv %s193
      %vm195 = vcmp.eq.s32.totalorder %v194, 1
      %v196 = vsel %vm195, %v190, %v175
      %v197 = vsel %vm195, %v175, %v176
      %s198 = scalar_lea.vmem %s102, 32
      %v199 = vld [vmem:[%s198] sm:$0xff]
      %200 = vrot.lane.b32.xlu0 %v196, 1
      %v201 = vpop.permute.xlu0 %200
      %v202 = vsel %vm112, 0.0, %v201
      %203 = vrot.lane.b32.xlu0 %v197, 1
      %v204 = vpop.permute.xlu0 %203
      %v205 = vsel %vm112, 0.0, %v204
      %v206 = vadd.f32 %v205, 1.0
      %v207 = vmul.f32 %v199, %v206
      %v208 = vsub.f32 1.0, %v199
      %v209 = vmax.f32 %v196, %v202
      %v210 = vmul.f32 %v208, %v209
      %v211 = vadd.f32 %v207, %v210
      %s212 = sadd.s32 %s113, 4
      %p213 = scmp.lt.s32.totalorder %s212, 14
      %s214 = scalar_select %p213, 1, 0
      %v215 = vstv %s214
      %vm216 = vcmp.eq.s32.totalorder %v215, 1
      %v217 = vsel %vm216, %v211, %v196
      %v218 = vsel %vm216, %v196, %v197
      %s219 = scalar_lea.vmem %s102, 40
      %v220 = vld [vmem:[%s219] sm:$0xff]
      %221 = vrot.lane.b32.xlu0 %v217, 1
      %v222 = vpop.permute.xlu0 %221
      %v223 = vsel %vm112, 0.0, %v222
      %224 = vrot.lane.b32.xlu0 %v218, 1
      %v225 = vpop.permute.xlu0 %224
      %v226 = vsel %vm112, 0.0, %v225
      %v227 = vadd.f32 %v226, 1.0
      %v228 = vmul.f32 %v220, %v227
      %v229 = vsub.f32 1.0, %v220
      %v230 = vmax.f32 %v217, %v223
      %v231 = vmul.f32 %v229, %v230
      %v232 = vadd.f32 %v228, %v231
      %s233 = sadd.s32 %s113, 5
      %p234 = scmp.lt.s32.totalorder %s233, 14
      %s235 = scalar_select %p234, 1, 0
      %v236 = vstv %s235
      %vm237 = vcmp.eq.s32.totalorder %v236, 1
      %v238 = vsel %vm237, %v232, %v217
      %v239 = vsel %vm237, %v217, %v218
      %s240 = scalar_lea.vmem %s102, 48
      %v241 = vld [vmem:[%s240] sm:$0xff]
      %242 = vrot.lane.b32.xlu0 %v238, 1
      %v243 = vpop.permute.xlu0 %242
      %v244 = vsel %vm112, 0.0, %v243
      %245 = vrot.lane.b32.xlu0 %v239, 1
      %v246 = vpop.permute.xlu0 %245
      %v247 = vsel %vm112, 0.0, %v246
      %v248 = vadd.f32 %v247, 1.0
      %v249 = vmul.f32 %v241, %v248
      %v250 = vsub.f32 1.0, %v241
      %v251 = vmax.f32 %v238, %v244
      %v252 = vmul.f32 %v250, %v251
      %v253 = vadd.f32 %v249, %v252
      %s254 = sadd.s32 %s113, 6
      %p255 = scmp.lt.s32.totalorder %s254, 14
      %s256 = scalar_select %p255, 1, 0
      %v257 = vstv %s256
      %vm258 = vcmp.eq.s32.totalorder %v257, 1
      %v259 = vsel %vm258, %v253, %v238
      %v260 = vsel %vm258, %v238, %v239
      %s261 = scalar_lea.vmem %s102, 56
      %v262 = vld [vmem:[%s261] sm:$0xff]
      %263 = vrot.lane.b32.xlu0 %v259, 1
      %v264 = vpop.permute.xlu0 %263
      %v265 = vsel %vm112, 0.0, %v264
      %266 = vrot.lane.b32.xlu0 %v260, 1
      %v267 = vpop.permute.xlu0 %266
      %v268 = vsel %vm112, 0.0, %v267
      %v269 = vadd.f32 %v268, 1.0
      %v270 = vmul.f32 %v262, %v269
      %v271 = vsub.f32 1.0, %v262
      %v272 = vmax.f32 %v259, %v265
      %v273 = vmul.f32 %v271, %v272
      %v274 = vadd.f32 %v270, %v273
      %s275 = sadd.s32 %s113, 7
      %p276 = scmp.lt.s32.totalorder %s275, 14
      %s277 = scalar_select %p276, 1, 0
      %v278 = vstv %s277
      %vm279 = vcmp.eq.s32.totalorder %v278, 1
      %v280 = vsel %vm279, %v274, %v259
      %v281 = vsel %vm279, %v259, %v260
      %282 = vst [vmem:[#allocation2] sm:$0xff] %v280
      %283 = vst [vmem:[#allocation3] sm:$0xff] %v281
      %p284 = scmp.eq.s32.totalorder %s12, 1
      // Predicated region
      $region29: #{run.3} parent=23 // pred_check
        %p285 = pneg %p284
      $region30: #{run.3} parent=23 // pred_check_branch
        %287 = sbr.rel (%p285) target = $region32
      $region31: #{run.3} parent=23 // pred_region
        %v288 = vmin.f32 %v280, 100.0
        %289 = vst [vmem:[%s1] sm:$0xff] %v288
      $region32: #{run.3} parent=23 // pred_fallthru
        _
      // Predicated region
      $region33: #{run.3} parent=23 // pred_check
        %p290 = pneg %p51
      $region34: #{run.3} parent=23 // pred_check_branch
        %292 = sbr.rel (%p290) target = $region36
      $region35: #{run.3} parent=23 // pred_region
        _
      $region36: #{run.3} parent=23 // pred_fallthru
        _
      // Predicated region
      $region37: #{run.3} parent=23 // pred_check
        %p293 = pneg %p51
      $region38: #{run.3} parent=23 // pred_check_branch
        %295 = sbr.rel (%p293) target = $region40
      $region39: #{run.3} parent=23 // pred_region
        _
      $region40: #{run.3} parent=23 // pred_fallthru
        _
    $region24: #{run.3} parent=5 // pred_fallthru
      _
    %p296 = scmp.le.s32.totalorder 2, %s7
    // Predicated region
    $region41: #{run.3} parent=5 // pred_check
      %p297 = pneg %p296
    $region42: #{run.3} parent=5 // pred_check_branch
      %299 = sbr.rel (%p297) target = $region44
    $region43: #{run.3} parent=5 // pred_region
      %s300 = ssub.s32 %s7, 2
    $region44: #{run.3} parent=5 // pred_fallthru
      _
  $region6: #{run.3} parent=0 // loop_footer
    %s11 = sadd.s32 1, %s7
  $region7: #{run.3} parent=0 // loop_footer_branch
    %6 = sbr.rel target = $region3
  $region8: #{run.3} parent=0 // loop_exit
    _

</llo_original>
